<compile_context>
chip_gen: v7x
topology: tpu7x:2x2x1
jax: 0.10.0
libtpu: 0.0.40
codegen_flags: <defaults>
</compile_context>

<pallas_src>
import jax
import jax.numpy as jnp
from jax.experimental import pallas as pl
from jax.experimental.pallas import tpu as pltpu

_LANE = 128
_SUBLANE = 8
# Batch-tile granularity: 16 keeps sublane tiling valid for both f32 and
# bf16 (packed [16,128]) blocks.
_TILE_ALIGN = 16

_DEFAULT_VMEM_LIMIT = 64 * 1024 * 1024
_HAS_BUFFERED = hasattr(pl, "Buffered")


def _round_up(x: int, m: int) -> int:
    return ((x + m - 1) // m) * m


def _vmem_limit_bytes() -> int:
    """Generation-aware VMEM request.

    ~48 MiB on v7x (64 MiB physical, leave headroom for compiler scratch),
    ~108 MiB on v5e/v6e (128 MiB physical).  Falls back to 64 MiB if the
    hardware query is unavailable.
    """
    try:
        info = pltpu.get_tpu_info()
        phys = int(getattr(info, "vmem_capacity_bytes", 0) or 0)
    except Exception:
        phys = 0
    if phys <= 0:
        return _DEFAULT_VMEM_LIMIT
    return max(_DEFAULT_VMEM_LIMIT // 2,
               min(phys - 16 * 1024 * 1024, int(phys * 0.85)))


def _pick_tile_b(requested, batch, d_in_p, h_p, d_out_p,
                 x_itemsize, out_itemsize, vmem_limit):
    """Largest batch tile that fits the VMEM budget, but keep >=2 grid steps
    where possible so a 2-TC chip (v7x) shards the parallel batch axis."""
    b_su = _round_up(max(batch, _TILE_ALIGN), _TILE_ALIGN)

    # Resident footprint: Buffered(1) weights + biases.
    resident = d_in_p * h_p * 2 + h_p * d_out_p * 2 + (h_p + d_out_p) * 4
    # Per-batch-row footprint: double-buffered x tile, double-buffered output
    # tile, f32 hidden intermediate.
    per_row = 2 * d_in_p * x_itemsize + 2 * d_out_p * out_itemsize + h_p * 4
    budget = int(vmem_limit * 0.75) - resident
    if budget >= per_row * _TILE_ALIGN:
        vmem_cap = (budget // per_row) // _TILE_ALIGN * _TILE_ALIGN
    else:
        vmem_cap = _TILE_ALIGN

    tile = _round_up(max(int(requested), _TILE_ALIGN), _TILE_ALIGN)
    tile = min(tile, vmem_cap)

    # Prefer at least 2 grid steps for megacore sharding; shrink the tile
    # instead of collapsing small batches to a single step.
    if tile >= b_su and b_su >= 2 * _TILE_ALIGN:
        tile = _round_up((b_su + 1) // 2, _TILE_ALIGN)

    return max(_TILE_ALIGN, min(tile, b_su))


def _doc_encoder_kernel(x_ref, wt_ref, bw_ref, ut_ref, bu_ref, o_ref):
    # x_ref  : (TB, D_in_p)    input batch tile (f32 or bf16)
    # wt_ref : (D_in_p, H_p)   bf16 W^T (resident, single-buffered)
    # bw_ref : (1, H_p)        f32 W bias
    # ut_ref : (H_p, D_out_p)  bf16 U^T (resident, single-buffered)
    # bu_ref : (1, D_out_p)    f32 U bias
    # o_ref  : (TB, D_out_p)   output tile (bf16 by default)
    # bf16 cast on the VPU (free filler under the input DMA / MXU work).
    x = x_ref[...].astype(jnp.bfloat16)

    # Hidden layer: bf16 MXU matmul, f32 accumulate, f32 bias + tanh (EUP).
    h = jnp.dot(x, wt_ref[...], preferred_element_type=jnp.float32)
    h = jnp.tanh(h + bw_ref[...])

    # Output layer: cast activations to bf16 for the MXU, f32 accumulate,
    # f32 bias + relu epilogue, store in o_ref's dtype.
    y = jnp.dot(h.astype(jnp.bfloat16), ut_ref[...],
                preferred_element_type=jnp.float32)
    y = jnp.maximum(y + bu_ref[...], 0.0)
    o_ref[...] = y.astype(o_ref.dtype)


def prepare_doc_encoder_params(w, bw, u, bu):
    """One-time parameter prep: transpose, lane-pad to 128 multiples, bf16 cast.

    w  : [H, D_in]   (PyTorch nn.Linear weight layout)
    bw : [H]
    u  : [D_out, H]
    bu : [D_out]
    """
    h_dim, d_in = w.shape
    d_out, _ = u.shape
    # NOTE(v6e/v7x): if H / D_out land on a 128-but-not-256 multiple at
    # production sizes, consider padding those lane dims to 256 multiples for
    # full 2x256^2 MXU utilization (zero-pad is numerically exact).
    d_in_p = _round_up(d_in, _LANE)
    h_p = _round_up(h_dim, _LANE)
    d_out_p = _round_up(d_out, _LANE)

    wt = jnp.pad(w.T, ((0, d_in_p - d_in), (0, h_p - h_dim))).astype(jnp.bfloat16)
    ut = jnp.pad(u.T, ((0, h_p - h_dim), (0, d_out_p - d_out))).astype(jnp.bfloat16)
    bw2 = jnp.pad(bw.astype(jnp.float32), (0, h_p - h_dim)).reshape(1, h_p)
    bu2 = jnp.pad(bu.astype(jnp.float32), (0, d_out_p - d_out)).reshape(1, d_out_p)

    return {
        "wt": wt, "bw": bw2, "ut": ut, "bu": bu2,
        "d_in": d_in, "d_out": d_out,
    }


def doc_encoder(x, params, *, tile_b=512, out_dtype=jnp.bfloat16):
    """Fused DocEncoder forward.

    x      : [B, D_in] (any float dtype)
    params : output of prepare_doc_encoder_params
    returns [B, D_out] in out_dtype (bf16 by default; pass jnp.float32 if
            downstream strictly needs f32)
    """
    wt, bw2, ut, bu2 = params["wt"], params["bw"], params["ut"], params["bu"]
    d_in, d_out = params["d_in"], params["d_out"]

    B, d_in_x = x.shape
    d_in_p, h_p = wt.shape
    _, d_out_p = ut.shape
    assert d_in_x == d_in, "input feature dim mismatch with prepared params"

    vmem_limit = _vmem_limit_bytes()
    x_itemsize = jnp.dtype(x.dtype).itemsize
    out_itemsize = jnp.dtype(out_dtype).itemsize
    tile_b = _pick_tile_b(tile_b, B, d_in_p, h_p, d_out_p,
                          x_itemsize, out_itemsize, vmem_limit)
    b_p = _round_up(B, tile_b)

    # Pad only when actually needed (zero-pad is exact: padded K rows / lanes
    # contribute 0 and padded batch/output lanes are sliced off). When no pad
    # is needed, x goes straight in and the bf16 cast happens in-kernel.
    if (d_in_x != d_in_p) or (b_p != B):
        x_in = jnp.pad(x.astype(jnp.bfloat16),
                       ((0, b_p - B), (0, d_in_p - d_in_x)))
    else:
        x_in = x

    grid = (b_p // tile_b,)
    x_bytes = jnp.dtype(x_in.dtype).itemsize

    flops = 2 * b_p * (d_in_p * h_p + h_p * d_out_p)
    bytes_accessed = (b_p * d_in_p * x_bytes
                      + wt.size * 2 + ut.size * 2
                      + bw2.size * 4 + bu2.size * 4
                      + b_p * d_out_p * out_itemsize)
    cost = pl.CostEstimate(flops=flops,
                           transcendentals=b_p * h_p,
                           bytes_accessed=bytes_accessed)

    def build(single_buffer_weights):
        def const_spec(shape):
            # Resident tensors: block index never changes, so a single buffer
            # (no double-buffering) halves their VMEM footprint.
            if single_buffer_weights:
                return pl.BlockSpec(shape, lambda i: (0, 0),
                                    pipeline_mode=pl.Buffered(1))
            return pl.BlockSpec(shape, lambda i: (0, 0))

        return pl.pallas_call(
            _doc_encoder_kernel,
            out_shape=jax.ShapeDtypeStruct((b_p, d_out_p), out_dtype),
            grid_spec=pltpu.PrefetchScalarGridSpec(
                num_scalar_prefetch=0,
                grid=grid,
                in_specs=[
                    pl.BlockSpec((tile_b, d_in_p), lambda i: (i, 0)),  # x tile
                    const_spec((d_in_p, h_p)),                          # Wt
                    const_spec((1, h_p)),                               # bw
                    const_spec((h_p, d_out_p)),                         # Ut
                    const_spec((1, d_out_p)),                           # bu
                ],
                out_specs=pl.BlockSpec((tile_b, d_out_p), lambda i: (i, 0)),
            ),
            compiler_params=pltpu.CompilerParams(
                dimension_semantics=("parallel",),
                vmem_limit_bytes=vmem_limit,
            ),
            cost_estimate=cost,
        )

    try:
        out_p = build(_HAS_BUFFERED)(x_in, wt, bw2, ut, bu2)
    except Exception:
        if not _HAS_BUFFERED:
            raise
        # Fallback: same kernel with default (double-buffered) weight specs.
        out_p = build(False)(x_in, wt, bw2, ut, bu2)

    return out_p[:B, :d_out]


def doc_encoder_ref_f32(x, w, bw, u, bu):
    """Pure-JAX f32 reference mirroring the PyTorch forward."""
    h = jnp.tanh(x @ w.T + bw)
    y = h @ u.T + bu
    return jnp.maximum(y, 0.0)


def doc_encoder_ref_bf16(x, w, bw, u, bu):
    """Reference emulating the kernel's bf16-operand / f32-accumulate matmuls."""
    h = jnp.dot(x.astype(jnp.bfloat16), w.T.astype(jnp.bfloat16),
                preferred_element_type=jnp.float32)
    h = jnp.tanh(h + bw.astype(jnp.float32))
    y = jnp.dot(h.astype(jnp.bfloat16), u.T.astype(jnp.bfloat16),
                preferred_element_type=jnp.float32)
    y = y + bu.astype(jnp.float32)
    return jnp.maximum(y, 0.0)


if __name__ == "__main__":
    # Small DocEncoder-consistent shapes:
    #   batch=48, doc_input_size=32, doc_hidden_size=64, doc_output_size=16
    # (batch=48 exercises both batch padding and the >=2-step grid path).
    B, D_IN, H, D_OUT = 48, 32, 64, 16

    key = jax.random.PRNGKey(0)
    kx, kw, kbw, ku, kbu = jax.random.split(key, 5)

    x = jax.random.normal(kx, (B, D_IN), dtype=jnp.float32)
    # Deterministic "parameter init" (nn.Linear-like scale).
    w = jax.random.normal(kw, (H, D_IN), dtype=jnp.float32) * (1.0 / jnp.sqrt(D_IN))
    bw = jax.random.normal(kbw, (H,), dtype=jnp.float32) * 0.1
    u = jax.random.normal(ku, (D_OUT, H), dtype=jnp.float32) * (1.0 / jnp.sqrt(H))
    bu = jax.random.normal(kbu, (D_OUT,), dtype=jnp.float32) * 0.1

    # One-time parameter prep, then the fused kernel (bf16 output default).
    params = prepare_doc_encoder_params(w, bw, u, bu)
    out = doc_encoder(x, params)
    out = jax.block_until_ready(out)
    assert out.shape == (B, D_OUT)
    out_f32 = out.astype(jnp.float32)

    ref_bf16 = doc_encoder_ref_bf16(x, w, bw, u, bu)
    assert jnp.allclose(out_f32, ref_bf16, atol=2e-2, rtol=2e-2), \
        "mismatch vs bf16-emulated reference (bf16 output path)"

    ref_f32 = doc_encoder_ref_f32(x, w, bw, u, bu)
    assert jnp.allclose(out_f32, ref_f32, atol=6e-2, rtol=6e-2), \
        "mismatch vs f32 reference (bf16 output path)"

    # f32-output fallback path (for downstream consumers that need f32).
    out32 = jax.block_until_ready(doc_encoder(x, params, out_dtype=jnp.float32))
    assert out32.shape == (B, D_OUT)
    assert jnp.allclose(out32, ref_bf16, atol=1e-2, rtol=1e-2), \
        "mismatch vs bf16-emulated reference (f32 output path)"

    print("KERNEL_OK")
</pallas_src>

<mosaic_0001>
module attributes {stable_mosaic.version = 11 : i64} {
  func.func @_doc_encoder_kernel(%arg0: i32, %arg1: memref<32x128xbf16, #tpu.memory_space<vmem>>, %arg2: memref<128x128xbf16, #tpu.memory_space<vmem>>, %arg3: memref<1x128xf32, #tpu.memory_space<vmem>>, %arg4: memref<128x128xbf16, #tpu.memory_space<vmem>>, %arg5: memref<1x128xf32, #tpu.memory_space<vmem>>, %arg6: memref<32x128xbf16, #tpu.memory_space<vmem>>) attributes {dimension_semantics = [#tpu.dimension_semantics<parallel>], iteration_bounds = array<i64: 2>, scalar_prefetch = 0 : i64, scratch_operands = 0 : i64, tpu.core_type = #tpu.core_type<tc>, window_params = [{transform_indices = @transform_0, window_bounds = array<i64: 32, 128>}, {pipeline_mode = #tpu.pipeline_mode<synchronous>, transform_indices = @transform_1, window_bounds = array<i64: 128, 128>}, {pipeline_mode = #tpu.pipeline_mode<synchronous>, transform_indices = @transform_2, window_bounds = array<i64: 1, 128>}, {pipeline_mode = #tpu.pipeline_mode<synchronous>, transform_indices = @transform_3, window_bounds = array<i64: 128, 128>}, {pipeline_mode = #tpu.pipeline_mode<synchronous>, transform_indices = @transform_4, window_bounds = array<i64: 1, 128>}, {transform_indices = @transform_5, window_bounds = array<i64: 32, 128>}]} {
    %c0 = arith.constant 0 : index
    %c0_0 = arith.constant 0 : index
    %0 = vector.load %arg1[%c0, %c0_0] : memref<32x128xbf16, #tpu.memory_space<vmem>>, vector<32x128xbf16>
    %c0_1 = arith.constant 0 : index
    %c0_2 = arith.constant 0 : index
    %1 = vector.load %arg2[%c0_1, %c0_2] : memref<128x128xbf16, #tpu.memory_space<vmem>>, vector<128x128xbf16>
    %cst = arith.constant dense<0.000000e+00> : vector<32x128xf32>
    %2 = tpu.matmul %0, %1, %cst {dimension_numbers = #tpu.dot_dimension_numbers<[1], [0], [0], [1], [0, 0, 1, 1], [], []>} : vector<32x128xbf16>, vector<128x128xbf16>, vector<32x128xf32> -> vector<32x128xf32>
    %c0_3 = arith.constant 0 : index
    %c0_4 = arith.constant 0 : index
    %3 = vector.load %arg3[%c0_3, %c0_4] : memref<1x128xf32, #tpu.memory_space<vmem>>, vector<1x128xf32>
    %4 = vector.broadcast %3 : vector<1x128xf32> to vector<32x128xf32>
    %5 = arith.addf %2, %4 : vector<32x128xf32>
    %6 = math.tanh %5 : vector<32x128xf32>
    %7 = arith.truncf %6 : vector<32x128xf32> to vector<32x128xbf16>
    %c0_5 = arith.constant 0 : index
    %c0_6 = arith.constant 0 : index
    %8 = vector.load %arg4[%c0_5, %c0_6] : memref<128x128xbf16, #tpu.memory_space<vmem>>, vector<128x128xbf16>
    %cst_7 = arith.constant dense<0.000000e+00> : vector<32x128xf32>
    %9 = tpu.matmul %7, %8, %cst_7 {dimension_numbers = #tpu.dot_dimension_numbers<[1], [0], [0], [1], [0, 0, 1, 1], [], []>} : vector<32x128xbf16>, vector<128x128xbf16>, vector<32x128xf32> -> vector<32x128xf32>
    %c0_8 = arith.constant 0 : index
    %c0_9 = arith.constant 0 : index
    %10 = vector.load %arg5[%c0_8, %c0_9] : memref<1x128xf32, #tpu.memory_space<vmem>>, vector<1x128xf32>
    %11 = vector.broadcast %10 : vector<1x128xf32> to vector<32x128xf32>
    %12 = arith.addf %9, %11 : vector<32x128xf32>
    %cst_10 = arith.constant 0.000000e+00 : f32
    %13 = vector.broadcast %cst_10 : f32 to vector<32x128xf32>
    %14 = arith.maximumf %12, %13 : vector<32x128xf32>
    %15 = arith.truncf %14 : vector<32x128xf32> to vector<32x128xbf16>
    %c0_11 = arith.constant 0 : index
    %c0_12 = arith.constant 0 : index
    %16 = vector.load %arg6[%c0_11, %c0_12] : memref<32x128xbf16, #tpu.memory_space<vmem>>, vector<32x128xbf16>
    tpu.vector_store %arg6[%c0_11, %c0_12], %15 {strides = array<i32>} : memref<32x128xbf16, #tpu.memory_space<vmem>>, vector<32x128xbf16>,
    return
  }
  func.func @transform_0(%arg0: i32) -> (i32, i32) {
    %c0_i32 = arith.constant 0 : i32
    %c0_i32_0 = arith.constant 0 : i32
    return %arg0, %c0_i32 : i32, i32
  }
  func.func @transform_1(%arg0: i32) -> (i32, i32) {
    %c0_i32 = arith.constant 0 : i32
    %c0_i32_0 = arith.constant 0 : i32
    %c0_i32_1 = arith.constant 0 : i32
    return %c0_i32, %c0_i32_0 : i32, i32
  }
  func.func @transform_2(%arg0: i32) -> (i32, i32) {
    %c0_i32 = arith.constant 0 : i32
    %c0_i32_0 = arith.constant 0 : i32
    %c0_i32_1 = arith.constant 0 : i32
    return %c0_i32, %c0_i32_0 : i32, i32
  }
  func.func @transform_3(%arg0: i32) -> (i32, i32) {
    %c0_i32 = arith.constant 0 : i32
    %c0_i32_0 = arith.constant 0 : i32
    %c0_i32_1 = arith.constant 0 : i32
    return %c0_i32, %c0_i32_0 : i32, i32
  }
  func.func @transform_4(%arg0: i32) -> (i32, i32) {
    %c0_i32 = arith.constant 0 : i32
    %c0_i32_0 = arith.constant 0 : i32
    %c0_i32_1 = arith.constant 0 : i32
    return %c0_i32, %c0_i32_0 : i32, i32
  }
  func.func @transform_5(%arg0: i32) -> (i32, i32) {
    %c0_i32 = arith.constant 0 : i32
    %c0_i32_0 = arith.constant 0 : i32
    return %arg0, %c0_i32 : i32, i32
  }
}

module attributes {stable_mosaic.version = 11 : i64} {
  func.func @_doc_encoder_kernel(%arg0: i32, %arg1: memref<32x128xbf16, #tpu.memory_space<vmem>>, %arg2: memref<128x128xbf16, #tpu.memory_space<vmem>>, %arg3: memref<1x128xf32, #tpu.memory_space<vmem>>, %arg4: memref<128x128xbf16, #tpu.memory_space<vmem>>, %arg5: memref<1x128xf32, #tpu.memory_space<vmem>>, %arg6: memref<32x128xbf16, #tpu.memory_space<vmem>>) attributes {dimension_semantics = [#tpu.dimension_semantics<parallel>], iteration_bounds = array<i64: 2>, scalar_prefetch = 0 : i64, scratch_operands = 0 : i64, tpu.core_type = #tpu.core_type<tc>, window_params = [{transform_indices = @transform_0, window_bounds = array<i64: 32, 128>}, {pipeline_mode = #tpu.pipeline_mode<synchronous>, transform_indices = @transform_1, window_bounds = array<i64: 128, 128>}, {pipeline_mode = #tpu.pipeline_mode<synchronous>, transform_indices = @transform_2, window_bounds = array<i64: 1, 128>}, {pipeline_mode = #tpu.pipeline_mode<synchronous>, transform_indices = @transform_3, window_bounds = array<i64: 128, 128>}, {pipeline_mode = #tpu.pipeline_mode<synchronous>, transform_indices = @transform_4, window_bounds = array<i64: 1, 128>}, {transform_indices = @transform_5, window_bounds = array<i64: 32, 128>}]} {
    %c0 = arith.constant 0 : index
    %c0_0 = arith.constant 0 : index
    %0 = vector.load %arg1[%c0, %c0_0] : memref<32x128xbf16, #tpu.memory_space<vmem>>, vector<32x128xbf16>
    %c0_1 = arith.constant 0 : index
    %c0_2 = arith.constant 0 : index
    %1 = vector.load %arg2[%c0_1, %c0_2] : memref<128x128xbf16, #tpu.memory_space<vmem>>, vector<128x128xbf16>
    %cst = arith.constant dense<0.000000e+00> : vector<32x128xf32>
    %2 = tpu.matmul %0, %1, %cst {dimension_numbers = #tpu.dot_dimension_numbers<[1], [0], [0], [1], [0, 0, 1, 1], [], []>} : vector<32x128xbf16>, vector<128x128xbf16>, vector<32x128xf32> -> vector<32x128xf32>
    %c0_3 = arith.constant 0 : index
    %c0_4 = arith.constant 0 : index
    %3 = vector.load %arg3[%c0_3, %c0_4] : memref<1x128xf32, #tpu.memory_space<vmem>>, vector<1x128xf32>
    %4 = vector.broadcast %3 : vector<1x128xf32> to vector<32x128xf32>
    %5 = arith.addf %2, %4 : vector<32x128xf32>
    %6 = math.tanh %5 : vector<32x128xf32>
    %7 = arith.truncf %6 : vector<32x128xf32> to vector<32x128xbf16>
    %c0_5 = arith.constant 0 : index
    %c0_6 = arith.constant 0 : index
    %8 = vector.load %arg4[%c0_5, %c0_6] : memref<128x128xbf16, #tpu.memory_space<vmem>>, vector<128x128xbf16>
    %cst_7 = arith.constant dense<0.000000e+00> : vector<32x128xf32>
    %9 = tpu.matmul %7, %8, %cst_7 {dimension_numbers = #tpu.dot_dimension_numbers<[1], [0], [0], [1], [0, 0, 1, 1], [], []>} : vector<32x128xbf16>, vector<128x128xbf16>, vector<32x128xf32> -> vector<32x128xf32>
    %c0_8 = arith.constant 0 : index
    %c0_9 = arith.constant 0 : index
    %10 = vector.load %arg5[%c0_8, %c0_9] : memref<1x128xf32, #tpu.memory_space<vmem>>, vector<1x128xf32>
    %11 = vector.broadcast %10 : vector<1x128xf32> to vector<32x128xf32>
    %12 = arith.addf %9, %11 : vector<32x128xf32>
    %cst_10 = arith.constant 0.000000e+00 : f32
    %13 = vector.broadcast %cst_10 : f32 to vector<32x128xf32>
    %14 = arith.maximumf %12, %13 : vector<32x128xf32>
    %15 = arith.truncf %14 : vector<32x128xf32> to vector<32x128xbf16>
    %c0_11 = arith.constant 0 : index
    %c0_12 = arith.constant 0 : index
    %16 = vector.load %arg6[%c0_11, %c0_12] : memref<32x128xbf16, #tpu.memory_space<vmem>>, vector<32x128xbf16>
    tpu.vector_store %arg6[%c0_11, %c0_12], %15 {strides = array<i32>} : memref<32x128xbf16, #tpu.memory_space<vmem>>, vector<32x128xbf16>,
    return
  }
  func.func @transform_0(%arg0: i32) -> (i32, i32) {
    %c0_i32 = arith.constant 0 : i32
    %c0_i32_0 = arith.constant 0 : i32
    return %arg0, %c0_i32 : i32, i32
  }
  func.func @transform_1(%arg0: i32) -> (i32, i32) {
    %c0_i32 = arith.constant 0 : i32
    %c0_i32_0 = arith.constant 0 : i32
    %c0_i32_1 = arith.constant 0 : i32
    return %c0_i32, %c0_i32_0 : i32, i32
  }
  func.func @transform_2(%arg0: i32) -> (i32, i32) {
    %c0_i32 = arith.constant 0 : i32
    %c0_i32_0 = arith.constant 0 : i32
    %c0_i32_1 = arith.constant 0 : i32
    return %c0_i32, %c0_i32_0 : i32, i32
  }
  func.func @transform_3(%arg0: i32) -> (i32, i32) {
    %c0_i32 = arith.constant 0 : i32
    %c0_i32_0 = arith.constant 0 : i32
    %c0_i32_1 = arith.constant 0 : i32
    return %c0_i32, %c0_i32_0 : i32, i32
  }
  func.func @transform_4(%arg0: i32) -> (i32, i32) {
    %c0_i32 = arith.constant 0 : i32
    %c0_i32_0 = arith.constant 0 : i32
    %c0_i32_1 = arith.constant 0 : i32
    return %c0_i32, %c0_i32_0 : i32, i32
  }
  func.func @transform_5(%arg0: i32) -> (i32, i32) {
    %c0_i32 = arith.constant 0 : i32
    %c0_i32_0 = arith.constant 0 : i32
    return %arg0, %c0_i32 : i32, i32
  }
}

</mosaic_0001>

<llo_original>
// kernel: tpu_custom_call.1
$region0: #{tpu_custom_call.1}
  #allocation0 [shape = 'u32[]', space=smem, size = 0x4, offset = 0x4, fixed_abs, tag = 'smem constant byte address 0x4 - core index']
  #allocation1 [shape = 'u32[144,128]{1,0:T(1,128)}', space=vmem, size = 0x12000, scoped, tag = 'internal scratch']
  %s0 = inlined_call_operand.hbm [shape: bf16[64,128], index: 0, kind: input, shape index: {}]
  %s1 = inlined_call_operand.hbm [shape: bf16[128,128], index: 1, kind: input, shape index: {}]
  %s2 = inlined_call_operand.hbm [shape: f32[1,128], index: 2, kind: input, shape index: {}]
  %s3 = inlined_call_operand.hbm [shape: bf16[128,128], index: 3, kind: input, shape index: {}]
  %s4 = inlined_call_operand.hbm [shape: f32[1,128], index: 4, kind: input, shape index: {}]
  %s5 = inlined_call_operand.hbm [shape: bf16[64,128], index: 5, kind: output, shape index: {}]
  %s6 = sld [smem:[#allocation0]]
  $region73: #{tpu_custom_call.1} parent=0
    _
  %s8 = ssub.s32 1, %s6
  %s9 = scalar_select 0, %s8, %s6
  $region1: #{tpu_custom_call.1} parent=0
    #allocation2 [shape = 'u8[16384]{0}', space=vmem, size = 0x4000, scoped, tag = 'input window, operand 0']
    #allocation3 [shape = 's32[2]{0}', space=sflag, size = 0x8, scoped, tag = 'scoped memory for tpu_custom_call.1']
    #allocation4 [shape = 's32[2]{0}', space=sflag, size = 0x8, scoped, tag = 'scoped memory for tpu_custom_call.1']
    #allocation5 [shape = 'u8[32768]{0}', space=vmem, size = 0x8000, scoped, tag = 'input window, operand 1, single buffered']
    #allocation6 [shape = 's32[1]{0}', space=sflag, size = 0x4, scoped, tag = 'scoped memory for tpu_custom_call.1']
    #allocation7 [shape = 'u8[512]{0}', space=vmem, size = 0x400, scoped, tag = 'input window, operand 2, single buffered']
    #allocation8 [shape = 'u8[32768]{0}', space=vmem, size = 0x8000, scoped, tag = 'input window, operand 3, single buffered']
    #allocation9 [shape = 's32[1]{0}', space=sflag, size = 0x4, scoped, tag = 'scoped memory for tpu_custom_call.1']
    #allocation10 [shape = 'u8[512]{0}', space=vmem, size = 0x400, scoped, tag = 'input window, operand 4, single buffered']
    #allocation11 [shape = 'u8[16384]{0}', space=vmem, size = 0x4000, scoped, tag = 'output window, operand 0']
    %10 = vsyncpa [#allocation3], 0
    %s11 = scalar_lea.sflag [#allocation3], 1
    %12 = vsyncpa %s11, 0
    %13 = vsyncpa [#allocation6], 0
    %14 = vsyncpa [#allocation9], 0
    %15 = vsyncpa [#allocation4], 0
    %s16 = scalar_lea.sflag [#allocation4], 1
    %17 = vsyncpa %s16, 0
    loop: start=0, step=1, limit=4
    $region2: #{tpu_custom_call.1} parent=1 // loop_pre_header
      _
    $region3: #{tpu_custom_call.1} parent=1 // loop_header
      %s19 = sphi 0, %s23
      %p20 = scmp.ge.s32.totalorder %s19, 4
      %s29 = sphi 0, %s31
      %s32 = sphi 0, %s29
      %s33 = sphi 0, %s32
      %s49 = sphi 0, %s33
      %s53 = sphi 0, %s53
      %s55 = sphi 0, %s53
      %s56 = sphi 0, %s55
      %s70 = sphi 0, %s56
      %s74 = sphi 0, %s74
      %s76 = sphi 0, %s74
      %s77 = sphi 0, %s76
      %s91 = sphi 0, %s77
      %s95 = sphi 0, %s95
      %s97 = sphi 0, %s95
      %s98 = sphi 0, %s97
      %s112 = sphi 0, %s98
      %s116 = sphi 0, %s116
      %s118 = sphi 0, %s116
      %s119 = sphi 0, %s118
      %s133 = sphi 0, %s119
      %s139 = sphi 0, %s141
      %s142 = sphi 0, %s139
      %s143 = sphi 0, %s142
      %s159 = sphi 0, %s143
    $region4: #{tpu_custom_call.1} parent=1 // loop_header_branch
      %22 = sbr.rel (%p20) target = $region8
    $region5: #{tpu_custom_call.1} parent=1 // loop_body
      %s24 = ssub.s32 %s19, 1
      %s25 = ssub.s32 %s19, 2
      %s26 = sadd.s32 %s19, 1
      %s27 = ssub.s32 %s19, %s26
      %p28 = scmp.eq.s32.totalorder %s27, 0
      %s30 = sadd.s32 %s29, 1
      %s31 = scalar_select %p28, %s29, %s30
      %p34 = pneg %p28
      %p35 = scmp.eq.s32.totalorder %s19, 1
      %p36 = por %p34, %p35
      %p37 = scmp.ne.s32.totalorder %s29, %s32
      %p38 = scmp.eq.s32.totalorder %s19, 0
      %p39 = por %p37, %p38
      %p40 = scmp.ne.s32.totalorder %s29, %s32
      %p41 = scmp.eq.s32.totalorder %s24, 1
      %p42 = por %p40, %p41
      %p43 = scmp.ne.s32.totalorder %s32, %s33
      %p44 = scmp.eq.s32.totalorder %s24, 0
      %p45 = por %p43, %p44
      %p46 = scmp.ne.s32.totalorder %s32, %s33
      %p47 = scmp.eq.s32.totalorder %s25, 1
      %p48 = por %p46, %p47
      %p50 = scmp.ne.s32.totalorder %s33, %s49
      %p51 = scmp.eq.s32.totalorder %s25, 0
      %p52 = por %p50, %p51
      %s54 = sadd.s32 %s53, 1
      %p57 = scmp.eq.s32.totalorder %s19, 1
      %p58 = scmp.ne.s32.totalorder %s53, %s55
      %p59 = scmp.eq.s32.totalorder %s19, 0
      %p60 = por %p58, %p59
      %p61 = scmp.ne.s32.totalorder %s53, %s55
      %p62 = scmp.eq.s32.totalorder %s24, 1
      %p63 = por %p61, %p62
      %p64 = scmp.ne.s32.totalorder %s55, %s56
      %p65 = scmp.eq.s32.totalorder %s24, 0
      %p66 = por %p64, %p65
      %p67 = scmp.ne.s32.totalorder %s55, %s56
      %p68 = scmp.eq.s32.totalorder %s25, 1
      %p69 = por %p67, %p68
      %p71 = scmp.ne.s32.totalorder %s56, %s70
      %p72 = scmp.eq.s32.totalorder %s25, 0
      %p73 = por %p71, %p72
      %s75 = sadd.s32 %s74, 1
      %p78 = scmp.eq.s32.totalorder %s19, 1
      %p79 = scmp.ne.s32.totalorder %s74, %s76
      %p80 = scmp.eq.s32.totalorder %s19, 0
      %p81 = por %p79, %p80
      %p82 = scmp.ne.s32.totalorder %s74, %s76
      %p83 = scmp.eq.s32.totalorder %s24, 1
      %p84 = por %p82, %p83
      %p85 = scmp.ne.s32.totalorder %s76, %s77
      %p86 = scmp.eq.s32.totalorder %s24, 0
      %p87 = por %p85, %p86
      %p88 = scmp.ne.s32.totalorder %s76, %s77
      %p89 = scmp.eq.s32.totalorder %s25, 1
      %p90 = por %p88, %p89
      %p92 = scmp.ne.s32.totalorder %s77, %s91
      %p93 = scmp.eq.s32.totalorder %s25, 0
      %p94 = por %p92, %p93
      %s96 = sadd.s32 %s95, 1
      %p99 = scmp.eq.s32.totalorder %s19, 1
      %p100 = scmp.ne.s32.totalorder %s95, %s97
      %p101 = scmp.eq.s32.totalorder %s19, 0
      %p102 = por %p100, %p101
      %p103 = scmp.ne.s32.totalorder %s95, %s97
      %p104 = scmp.eq.s32.totalorder %s24, 1
      %p105 = por %p103, %p104
      %p106 = scmp.ne.s32.totalorder %s97, %s98
      %p107 = scmp.eq.s32.totalorder %s24, 0
      %p108 = por %p106, %p107
      %p109 = scmp.ne.s32.totalorder %s97, %s98
      %p110 = scmp.eq.s32.totalorder %s25, 1
      %p111 = por %p109, %p110
      %p113 = scmp.ne.s32.totalorder %s98, %s112
      %p114 = scmp.eq.s32.totalorder %s25, 0
      %p115 = por %p113, %p114
      %s117 = sadd.s32 %s116, 1
      %p120 = scmp.eq.s32.totalorder %s19, 1
      %p121 = scmp.ne.s32.totalorder %s116, %s118
      %p122 = scmp.eq.s32.totalorder %s19, 0
      %p123 = por %p121, %p122
      %p124 = scmp.ne.s32.totalorder %s116, %s118
      %p125 = scmp.eq.s32.totalorder %s24, 1
      %p126 = por %p124, %p125
      %p127 = scmp.ne.s32.totalorder %s118, %s119
      %p128 = scmp.eq.s32.totalorder %s24, 0
      %p129 = por %p127, %p128
      %p130 = scmp.ne.s32.totalorder %s118, %s119
      %p131 = scmp.eq.s32.totalorder %s25, 1
      %p132 = por %p130, %p131
      %p134 = scmp.ne.s32.totalorder %s119, %s133
      %p135 = scmp.eq.s32.totalorder %s25, 0
      %p136 = por %p134, %p135
      %s137 = ssub.s32 %s19, %s26
      %p138 = scmp.eq.s32.totalorder %s137, 0
      %s140 = sadd.s32 %s139, 1
      %s141 = scalar_select %p138, %s139, %s140
      %p144 = pneg %p138
      %p145 = scmp.eq.s32.totalorder %s19, 1
      %p146 = por %p144, %p145
      %p147 = scmp.ne.s32.totalorder %s139, %s142
      %p148 = scmp.eq.s32.totalorder %s19, 0
      %p149 = por %p147, %p148
      %p150 = scmp.ne.s32.totalorder %s139, %s142
      %p151 = scmp.eq.s32.totalorder %s24, 1
      %p152 = por %p150, %p151
      %p153 = scmp.ne.s32.totalorder %s142, %s143
      %p154 = scmp.eq.s32.totalorder %s24, 0
      %p155 = por %p153, %p154
      %p156 = scmp.ne.s32.totalorder %s142, %s143
      %p157 = scmp.eq.s32.totalorder %s25, 1
      %p158 = por %p156, %p157
      %p160 = scmp.ne.s32.totalorder %s143, %s159
      %p161 = scmp.eq.s32.totalorder %s25, 0
      %p162 = por %p160, %p161
      %p163 = scmp.le.s32.totalorder 1, %s19
      %p164 = scmp.lt.s32.totalorder %s19, 3
      %p165 = pnand %p163, %p164
      %p166 = pneg %p165
      // Predicated region
      $region9: #{tpu_custom_call.1} parent=5 // pred_check
        _
      $region10: #{tpu_custom_call.1} parent=5 // pred_check_branch
        %168 = sbr.rel (%p165) target = $region12
      $region11: #{tpu_custom_call.1} parent=5 // pred_region
        %s169 = ssub.s32 %s19, 1
        // Predicated region
        $region13: #{tpu_custom_call.1} parent=11 // pred_check
          %p170 = pneg %p66
        $region14: #{tpu_custom_call.1} parent=11 // pred_check_branch
          %172 = sbr.rel (%p170) target = $region16
        $region15: #{tpu_custom_call.1} parent=11 // pred_region
          %s174 = ssub.s32 1024, 1024
          %175 = vsyncadd [#allocation6], %s174
          %s176 = sshll.u32 [#allocation5], 4
          %s177 = int_to_ptr.vmem [resolvable:$true] %s176
          %182 = dma.hbm_to_vmem [thread:$0]  %s1, 1024, %s177, [#allocation6], 64, 64, 4
        $region16: #{tpu_custom_call.1} parent=11 // pred_fallthru
          _
        // Predicated region
        $region17: #{tpu_custom_call.1} parent=11 // pred_check
          %p183 = pneg %p87
        $region18: #{tpu_custom_call.1} parent=11 // pred_check_branch
          %185 = sbr.rel (%p183) target = $region20
        $region19: #{tpu_custom_call.1} parent=11 // pred_region
          %s187 = ssub.s32 16, 16
          %188 = vsyncadd [#allocation6], %s187
          %s190 = sshll.u32 [#allocation7], 4
          %s191 = int_to_ptr.vmem [resolvable:$true] %s190
          %193 = dma.hbm_to_vmem [thread:$0]  %s2, 16, %s191, [#allocation6]
        $region20: #{tpu_custom_call.1} parent=11 // pred_fallthru
          _
        // Predicated region
        $region21: #{tpu_custom_call.1} parent=11 // pred_check
          %p194 = pneg %p108
        $region22: #{tpu_custom_call.1} parent=11 // pred_check_branch
          %196 = sbr.rel (%p194) target = $region24
        $region23: #{tpu_custom_call.1} parent=11 // pred_region
          %s198 = ssub.s32 1024, 1024
          %199 = vsyncadd [#allocation9], %s198
          %s200 = sshll.u32 [#allocation8], 4
          %s201 = int_to_ptr.vmem [resolvable:$true] %s200
          %206 = dma.hbm_to_vmem [thread:$0]  %s3, 1024, %s201, [#allocation9], 64, 64, 4
        $region24: #{tpu_custom_call.1} parent=11 // pred_fallthru
          _
        // Predicated region
        $region25: #{tpu_custom_call.1} parent=11 // pred_check
          %p207 = pneg %p129
        $region26: #{tpu_custom_call.1} parent=11 // pred_check_branch
          %209 = sbr.rel (%p207) target = $region28
        $region27: #{tpu_custom_call.1} parent=11 // pred_region
          %s211 = ssub.s32 16, 16
          %212 = vsyncadd [#allocation9], %s211
          %s214 = sshll.u32 [#allocation10], 4
          %s215 = int_to_ptr.vmem [resolvable:$true] %s214
          %217 = dma.hbm_to_vmem [thread:$0]  %s4, 16, %s215, [#allocation9]
        $region28: #{tpu_custom_call.1} parent=11 // pred_fallthru
          _
      $region12: #{tpu_custom_call.1} parent=5 // pred_fallthru
        _
      %p218 = scmp.lt.s32.totalorder %s19, 2
      // Predicated region
      $region29: #{tpu_custom_call.1} parent=5 // pred_check
        %p219 = pneg %p218
      $region30: #{tpu_custom_call.1} parent=5 // pred_check_branch
        %221 = sbr.rel (%p219) target = $region32
      $region31: #{tpu_custom_call.1} parent=5 // pred_region
        // Predicated region
        $region33: #{tpu_custom_call.1} parent=31 // pred_check
          %p222 = pneg %p39
        $region34: #{tpu_custom_call.1} parent=31 // pred_check_branch
          %224 = sbr.rel (%p222) target = $region36
        $region35: #{tpu_custom_call.1} parent=31 // pred_region
          %s225 = sand.u32 %s29, 1
          %s226 = scalar_lea.sflag [#allocation3], %s225
          %s227 = sand.u32 %s29, 1
          %s228 = smul.addr %s227, 16
          %s229 = scalar_lea.vmem [#allocation2], %s228
          %s230 = smul.u32 4, %s19
          %s232 = ssub.s32 256, 256
          %233 = vsyncadd %s226, %s232
          %s234 = smul.addr %s230, 64
          %s235 = scalar_lea.hbm %s0, %s234
          %s236 = sshll.u32 %s229, 4
          %s237 = int_to_ptr.vmem [resolvable:$true] %s236
          %242 = dma.hbm_to_vmem [thread:$0]  %s235, 256, %s237, %s226, 64, 64, 4
        $region36: #{tpu_custom_call.1} parent=31 // pred_fallthru
          _
      $region32: #{tpu_custom_call.1} parent=5 // pred_fallthru
        _
      %p243 = scmp.le.s32.totalorder 1, %s19
      %p244 = scmp.lt.s32.totalorder %s19, 3
      %p245 = pnand %p243, %p244
      %p246 = pneg %p245
      // Predicated region
      $region37: #{tpu_custom_call.1} parent=5 // pred_check
        _
      $region38: #{tpu_custom_call.1} parent=5 // pred_check_branch
        %248 = sbr.rel (%p245) target = $region40
      $region39: #{tpu_custom_call.1} parent=5 // pred_region
        %s249 = ssub.s32 %s19, 1
        %s250 = sand.u32 %s32, 1
        %s251 = scalar_lea.sflag [#allocation3], %s250
        %s252 = sand.u32 %s32, 1
        %s253 = smul.addr %s252, 16
        %s254 = scalar_lea.vmem [#allocation2], %s253
        // Predicated region
        $region41: #{tpu_custom_call.1} parent=39 // pred_check
          %p255 = pneg %p45
        $region42: #{tpu_custom_call.1} parent=39 // pred_check_branch
          %257 = sbr.rel (%p255) target = $region44
        $region43: #{tpu_custom_call.1} parent=39 // pred_region
          %258 = dma.done %s251, 256
        $region44: #{tpu_custom_call.1} parent=39 // pred_fallthru
          _
        // Predicated region
        $region45: #{tpu_custom_call.1} parent=39 // pred_check
          %p259 = pneg %p66
        $region46: #{tpu_custom_call.1} parent=39 // pred_check_branch
          %261 = sbr.rel (%p259) target = $region48
        $region47: #{tpu_custom_call.1} parent=39 // pred_region
          %262 = dma.done [#allocation6], 1024
        $region48: #{tpu_custom_call.1} parent=39 // pred_fallthru
          _
        // Predicated region
        $region49: #{tpu_custom_call.1} parent=39 // pred_check
          %p263 = pneg %p87
        $region50: #{tpu_custom_call.1} parent=39 // pred_check_branch
          %265 = sbr.rel (%p263) target = $region52
        $region51: #{tpu_custom_call.1} parent=39 // pred_region
          %266 = dma.done [#allocation6], 16
        $region52: #{tpu_custom_call.1} parent=39 // pred_fallthru
          _
        // Predicated region
        $region53: #{tpu_custom_call.1} parent=39 // pred_check
          %p267 = pneg %p108
        $region54: #{tpu_custom_call.1} parent=39 // pred_check_branch
          %269 = sbr.rel (%p267) target = $region56
        $region55: #{tpu_custom_call.1} parent=39 // pred_region
          %270 = dma.done [#allocation9], 1024
        $region56: #{tpu_custom_call.1} parent=39 // pred_fallthru
          _
        // Predicated region
        $region57: #{tpu_custom_call.1} parent=39 // pred_check
          %p271 = pneg %p129
        $region58: #{tpu_custom_call.1} parent=39 // pred_check_branch
          %273 = sbr.rel (%p271) target = $region60
        $region59: #{tpu_custom_call.1} parent=39 // pred_region
          %274 = dma.done [#allocation9], 16
        $region60: #{tpu_custom_call.1} parent=39 // pred_fallthru
          _
        %s275 = sand.u32 %s32, 1
        %s276 = scalar_lea.sflag [#allocation3], %s275
        %s277 = sand.u32 %s32, 1
        %s278 = smul.addr %s277, 16
        %s279 = scalar_lea.vmem [#allocation2], %s278
        %p280 = pneg %p45
        %p281 = pneg %p42
        %p282 = pneg %p66
        %p283 = pneg %p63
        %p284 = pneg %p87
        %p285 = pneg %p84
        %p286 = pneg %p108
        %p287 = pneg %p105
        %p288 = pneg %p129
        %p289 = pneg %p126
        %p290 = pneg %p155
        %p291 = pneg %p152
        %s292 = sand.u32 %s142, 1
        %s293 = scalar_lea.sflag [#allocation4], %s292
        %s294 = sand.u32 %s142, 1
        %s295 = smul.addr %s294, 16
        %s296 = scalar_lea.vmem [#allocation11], %s295
        %s297 = smul.u32 4, %s24
        %s298 = smul.u32 4, %s24
        %v300 = vld [vmem:[%s254] sm:$0xf]
        %v301 = vld [vmem:[%s254 + $0x4] sm:$0xf]
        %v302 = vld [vmem:[%s254 + $0x8] sm:$0xf]
        %v303 = vld [vmem:[%s254 + $0xc] sm:$0xf]
        %v304 = vld [vmem:[#allocation5] sm:$0xf]
        %v305 = vld [vmem:[#allocation5 + $0x4] sm:$0xf]
        %v306 = vld [vmem:[#allocation5 + $0x8] sm:$0xf]
        %v307 = vld [vmem:[#allocation5 + $0xc] sm:$0xf]
        %v308 = vld [vmem:[#allocation5 + $0x10] sm:$0xf]
        %v309 = vld [vmem:[#allocation5 + $0x14] sm:$0xf]
        %v310 = vld [vmem:[#allocation5 + $0x18] sm:$0xf]
        %v311 = vld [vmem:[#allocation5 + $0x1c] sm:$0xf]
        %v312 = vld [vmem:[#allocation5 + $0x20] sm:$0xf]
        %v313 = vld [vmem:[#allocation5 + $0x24] sm:$0xf]
        %v314 = vld [vmem:[#allocation5 + $0x28] sm:$0xf]
        %v315 = vld [vmem:[#allocation5 + $0x2c] sm:$0xf]
        %v316 = vld [vmem:[#allocation5 + $0x30] sm:$0xf]
        %v317 = vld [vmem:[#allocation5 + $0x34] sm:$0xf]
        %v318 = vld [vmem:[#allocation5 + $0x38] sm:$0xf]
        %v319 = vld [vmem:[#allocation5 + $0x3c] sm:$0xf]
        %v320 = vld [vmem:[#allocation7] sm:$0x1]
        %v322 = vlaneseq
        %v323 = vshrl.u32 %v322, 7
        %v324 = vsub.s32 0, %v323
        %v325 = vrot.slane %v320, %v324
        %v331 = vunpack.c.l.b16 %v300
        %v332 = vunpack.c.l.b16 %v301
        %v333 = vunpack.c.l.b16 %v302
        %v334 = vunpack.c.l.b16 %v303
        %v335 = vpack.c.b16 %v332, %v331
        %v336 = vpack.c.b16 %v334, %v333
        %v355 = vunpack.c.l.b16 %v304
        %v356 = vunpack.c.l.b16 %v305
        %v357 = vunpack.c.l.b16 %v306
        %v358 = vunpack.c.l.b16 %v307
        %v359 = vunpack.c.l.b16 %v308
        %v360 = vunpack.c.l.b16 %v309
        %v361 = vunpack.c.l.b16 %v310
        %v362 = vunpack.c.l.b16 %v311
        %v363 = vunpack.c.l.b16 %v312
        %v364 = vunpack.c.l.b16 %v313
        %v365 = vunpack.c.l.b16 %v314
        %v366 = vunpack.c.l.b16 %v315
        %v367 = vunpack.c.l.b16 %v316
        %v368 = vunpack.c.l.b16 %v317
        %v369 = vunpack.c.l.b16 %v318
        %v370 = vunpack.c.l.b16 %v319
        %v371 = vpack.c.b16 %v356, %v355
        %v372 = vpack.c.b16 %v358, %v357
        %v373 = vpack.c.b16 %v360, %v359
        %v374 = vpack.c.b16 %v362, %v361
        %v375 = vpack.c.b16 %v364, %v363
        %v376 = vpack.c.b16 %v366, %v365
        %v377 = vpack.c.b16 %v368, %v367
        %v378 = vpack.c.b16 %v370, %v369
        %387 = vmatprep.subr.bf16.mxu0 0
        %388 = vmatpush1.bf16.msra.mxu0 %v371
        %389 = vmatprep.subr.bf16.mxu0 0
        %390 = vmatpush1.bf16.msra.mxu0 %v372
        %391 = vmatprep.subr.bf16.mxu0 0
        %392 = vmatpush1.bf16.msra.mxu0 %v373
        %393 = vmatprep.subr.bf16.mxu0 0
        %394 = vmatpush1.bf16.msra.mxu0 %v374
        %395 = vmatprep.subr.bf16.mxu0 0
        %396 = vmatpush1.bf16.msra.mxu0 %v375
        %397 = vmatprep.subr.bf16.mxu0 0
        %398 = vmatpush1.bf16.msra.mxu0 %v376
        %399 = vmatprep.subr.bf16.mxu0 0
        %400 = vmatpush1.bf16.msra.mxu0 %v377
        %401 = vmatprep.subr.bf16.mxu0 0
        %402 = vmatpush1.bf16.msra.mxu0 %v378
        %403 = vmatprep.subr.bf16.mxu0 0
        %404 = vmatpush1.bf16.msra.mxu0 0
        %405 = vmatprep.subr.bf16.mxu0 0
        %406 = vmatpush1.bf16.msra.mxu0 0
        %407 = vmatprep.subr.bf16.mxu0 0
        %408 = vmatpush1.bf16.msra.mxu0 0
        %409 = vmatprep.subr.bf16.mxu0 0
        %410 = vmatpush1.bf16.msra.mxu0 0
        %411 = vmatprep.subr.bf16.mxu0 0
        %412 = vmatpush1.bf16.msra.mxu0 0
        %413 = vmatprep.subr.bf16.mxu0 0
        %414 = vmatpush1.bf16.msra.mxu0 0
        %415 = vmatprep.subr.bf16.mxu0 0
        %416 = vmatpush1.bf16.msra.mxu0 0
        %417 = vmatprep.subr.bf16.mxu0 0
        %418 = vmatpush1.bf16.msra.mxu0 0
        %419 = vmatprep.mubr.bf16.mxu0 0
        %420 = vmatmul.mubr.bf16.gmra.mrb[0].mxu0 %v335
        %v421 = vpop.f32.mrb[0].mxu0
        %v422 = vadd.f32 %v325, %v421
        %v423 = vpop.f32.mrb[0].mxu0
        %v424 = vpop.f32.mrb[0].mxu0
        %v425 = vadd.f32 %v325, %v424
        %v426 = vpop.f32.mrb[0].mxu0
        %427 = vmatprep.mubr.bf16.mxu0 0
        %428 = vmatmul.mubr.bf16.gmra.mrb[0].mxu0 %v336
        %v429 = vpop.f32.mrb[0].mxu0
        %v430 = vadd.f32 %v325, %v429
        %v431 = vpop.f32.mrb[0].mxu0
        %v432 = vpop.f32.mrb[0].mxu0
        %v433 = vadd.f32 %v325, %v432
        %v434 = vpop.f32.mrb[0].mxu0
        %435 = vdwg.mxu0
        %v436 = vtanh.pop %v422
        %v437 = vtanh.pop %v425
        %v438 = vtanh.pop %v430
        %v439 = vtanh.pop %v433
        %v440 = vpack.c.bf16 %v437, %v436
        %v441 = vpack.c.bf16 %v439, %v438
        %v442 = vld [vmem:[#allocation8] sm:$0xf]
        %v443 = vld [vmem:[#allocation8 + $0x4] sm:$0xf]
        %v444 = vld [vmem:[#allocation8 + $0x8] sm:$0xf]
        %v445 = vld [vmem:[#allocation8 + $0xc] sm:$0xf]
        %v446 = vld [vmem:[#allocation8 + $0x10] sm:$0xf]
        %v447 = vld [vmem:[#allocation8 + $0x14] sm:$0xf]
        %v448 = vld [vmem:[#allocation8 + $0x18] sm:$0xf]
        %v449 = vld [vmem:[#allocation8 + $0x1c] sm:$0xf]
        %v450 = vld [vmem:[#allocation8 + $0x20] sm:$0xf]
        %v451 = vld [vmem:[#allocation8 + $0x24] sm:$0xf]
        %v452 = vld [vmem:[#allocation8 + $0x28] sm:$0xf]
        %v453 = vld [vmem:[#allocation8 + $0x2c] sm:$0xf]
        %v454 = vld [vmem:[#allocation8 + $0x30] sm:$0xf]
        %v455 = vld [vmem:[#allocation8 + $0x34] sm:$0xf]
        %v456 = vld [vmem:[#allocation8 + $0x38] sm:$0xf]
        %v457 = vld [vmem:[#allocation8 + $0x3c] sm:$0xf]
        %v458 = vld [vmem:[#allocation10] sm:$0x1]
        %v460 = vlaneseq
        %v461 = vshrl.u32 %v460, 7
        %v462 = vsub.s32 0, %v461
        %v463 = vrot.slane %v458, %v462
        %v481 = vunpack.c.l.b16 %v442
        %v482 = vunpack.c.l.b16 %v443
        %v483 = vunpack.c.l.b16 %v444
        %v484 = vunpack.c.l.b16 %v445
        %v485 = vunpack.c.l.b16 %v446
        %v486 = vunpack.c.l.b16 %v447
        %v487 = vunpack.c.l.b16 %v448
        %v488 = vunpack.c.l.b16 %v449
        %v489 = vunpack.c.l.b16 %v450
        %v490 = vunpack.c.l.b16 %v451
        %v491 = vunpack.c.l.b16 %v452
        %v492 = vunpack.c.l.b16 %v453
        %v493 = vunpack.c.l.b16 %v454
        %v494 = vunpack.c.l.b16 %v455
        %v495 = vunpack.c.l.b16 %v456
        %v496 = vunpack.c.l.b16 %v457
        %v497 = vpack.c.b16 %v482, %v481
        %v498 = vpack.c.b16 %v484, %v483
        %v499 = vpack.c.b16 %v486, %v485
        %v500 = vpack.c.b16 %v488, %v487
        %v501 = vpack.c.b16 %v490, %v489
        %v502 = vpack.c.b16 %v492, %v491
        %v503 = vpack.c.b16 %v494, %v493
        %v504 = vpack.c.b16 %v496, %v495
        %513 = vmatprep.subr.bf16.mxu0 0
        %514 = vmatpush1.bf16.msra.mxu0 %v497
        %515 = vmatprep.subr.bf16.mxu0 0
        %516 = vmatpush1.bf16.msra.mxu0 %v498
        %517 = vmatprep.subr.bf16.mxu0 0
        %518 = vmatpush1.bf16.msra.mxu0 %v499
        %519 = vmatprep.subr.bf16.mxu0 0
        %520 = vmatpush1.bf16.msra.mxu0 %v500
        %521 = vmatprep.subr.bf16.mxu0 0
        %522 = vmatpush1.bf16.msra.mxu0 %v501
        %523 = vmatprep.subr.bf16.mxu0 0
        %524 = vmatpush1.bf16.msra.mxu0 %v502
        %525 = vmatprep.subr.bf16.mxu0 0
        %526 = vmatpush1.bf16.msra.mxu0 %v503
        %527 = vmatprep.subr.bf16.mxu0 0
        %528 = vmatpush1.bf16.msra.mxu0 %v504
        %529 = vmatprep.subr.bf16.mxu0 0
        %530 = vmatpush1.bf16.msra.mxu0 0
        %531 = vmatprep.subr.bf16.mxu0 0
        %532 = vmatpush1.bf16.msra.mxu0 0
        %533 = vmatprep.subr.bf16.mxu0 0
        %534 = vmatpush1.bf16.msra.mxu0 0
        %535 = vmatprep.subr.bf16.mxu0 0
        %536 = vmatpush1.bf16.msra.mxu0 0
        %537 = vmatprep.subr.bf16.mxu0 0
        %538 = vmatpush1.bf16.msra.mxu0 0
        %539 = vmatprep.subr.bf16.mxu0 0
        %540 = vmatpush1.bf16.msra.mxu0 0
        %541 = vmatprep.subr.bf16.mxu0 0
        %542 = vmatpush1.bf16.msra.mxu0 0
        %543 = vmatprep.subr.bf16.mxu0 0
        %544 = vmatpush1.bf16.msra.mxu0 0
        %545 = vmatprep.mubr.bf16.mxu0 0
        %546 = vmatmul.mubr.bf16.gmra.mrb[0].mxu0 %v440
        %v547 = vpop.f32.mrb[0].mxu0
        %v548 = vadd.f32 %v463, %v547
        %v549 = vpop.f32.mrb[0].mxu0
        %v550 = vpop.f32.mrb[0].mxu0
        %v551 = vadd.f32 %v463, %v550
        %v552 = vpop.f32.mrb[0].mxu0
        %553 = vmatprep.mubr.bf16.mxu0 0
        %554 = vmatmul.mubr.bf16.gmra.mrb[0].mxu0 %v441
        %v555 = vpop.f32.mrb[0].mxu0
        %v556 = vadd.f32 %v463, %v555
        %v557 = vpop.f32.mrb[0].mxu0
        %v558 = vpop.f32.mrb[0].mxu0
        %v559 = vadd.f32 %v463, %v558
        %v560 = vpop.f32.mrb[0].mxu0
        %561 = vdwg.mxu0
        %v562 = vmax.f32 %v548, 0.0
        %v563 = vmax.f32 %v551, 0.0
        %v564 = vmax.f32 %v556, 0.0
        %v565 = vmax.f32 %v559, 0.0
        %v566 = vpack.c.bf16 %v563, %v562
        %v567 = vpack.c.bf16 %v565, %v564
        %v570 = vunpack.c.l.b16 %v566
        %v571 = vunpack.c.h.b16 %v566
        %v572 = vunpack.c.l.b16 %v567
        %v573 = vunpack.c.h.b16 %v567
        %v574 = vpack.c.b16 %v570, %v570
        %v575 = vpack.c.b16 %v571, %v571
        %v576 = vpack.c.b16 %v572, %v572
        %v577 = vpack.c.b16 %v573, %v573
        %582 = vst [vmem:[%s296] sm:$0xf] %v574
        %583 = vst [vmem:[%s296 + $0x4] sm:$0xf] %v575
        %584 = vst [vmem:[%s296 + $0x8] sm:$0xf] %v576
        %585 = vst [vmem:[%s296 + $0xc] sm:$0xf] %v577
        %s586 = sand.u32 %s142, 1
        %s587 = scalar_lea.sflag [#allocation4], %s586
        %s588 = sand.u32 %s142, 1
        %s589 = smul.addr %s588, 16
        %s590 = scalar_lea.vmem [#allocation11], %s589
        // Predicated region
        $region61: #{tpu_custom_call.1} parent=39 // pred_check
          %p591 = pneg %p152
        $region62: #{tpu_custom_call.1} parent=39 // pred_check_branch
          %593 = sbr.rel (%p591) target = $region64
        $region63: #{tpu_custom_call.1} parent=39 // pred_region
          %s594 = smul.u32 4, %s24
          %s596 = ssub.s32 256, 256
          %597 = vsyncadd %s587, %s596
          %s598 = smul.addr %s594, 64
          %s599 = scalar_lea.hbm %s5, %s598
          %s600 = sshll.u32 %s590, 4
          %s601 = int_to_ptr.vmem [resolvable:$true] %s600
          %606 = dma.vmem_to_hbm [thread:$0]  %s601, 256, %s599, %s587, 64, 64, 4
        $region64: #{tpu_custom_call.1} parent=39 // pred_fallthru
          _
      $region40: #{tpu_custom_call.1} parent=5 // pred_fallthru
        _
      %p607 = scmp.le.s32.totalorder 2, %s19
      // Predicated region
      $region65: #{tpu_custom_call.1} parent=5 // pred_check
        %p608 = pneg %p607
      $region66: #{tpu_custom_call.1} parent=5 // pred_check_branch
        %610 = sbr.rel (%p608) target = $region68
      $region67: #{tpu_custom_call.1} parent=5 // pred_region
        %s611 = ssub.s32 %s19, 2
        // Predicated region
        $region69: #{tpu_custom_call.1} parent=67 // pred_check
          %p612 = pneg %p158
        $region70: #{tpu_custom_call.1} parent=67 // pred_check_branch
          %614 = sbr.rel (%p612) target = $region72
        $region71: #{tpu_custom_call.1} parent=67 // pred_region
          %s615 = sand.u32 %s143, 1
          %s616 = scalar_lea.sflag [#allocation4], %s615
          %s617 = sand.u32 %s143, 1
          %s618 = smul.addr %s617, 16
          %s619 = scalar_lea.vmem [#allocation11], %s618
          %620 = dma.done %s616, 256
        $region72: #{tpu_custom_call.1} parent=67 // pred_fallthru
          _
      $region68: #{tpu_custom_call.1} parent=5 // pred_fallthru
        _
    $region6: #{tpu_custom_call.1} parent=1 // loop_footer
      %s23 = sadd.s32 1, %s19
    $region7: #{tpu_custom_call.1} parent=1 // loop_footer_branch
      %18 = sbr.rel target = $region3
    $region8: #{tpu_custom_call.1} parent=1 // loop_exit
      _
    %621 = vsyncpa [#allocation3], 1
    %s622 = scalar_lea.sflag [#allocation3], 1
    %623 = vsyncpa %s622, 1
    %624 = vsyncpa [#allocation6], 1
    %625 = vsyncpa [#allocation9], 1
    %626 = vsyncpa [#allocation4], 1
    %s627 = scalar_lea.sflag [#allocation4], 1
    %628 = vsyncpa %s627, 1

// kernel: tpu_custom_call.1
$region0: #{tpu_custom_call.1}
  #allocation0 [shape = 'u32[]', space=smem, size = 0x4, offset = 0x4, fixed_abs, tag = 'smem constant byte address 0x4 - core index']
  #allocation1 [shape = 'u32[144,128]{1,0:T(1,128)}', space=vmem, size = 0x12000, scoped, tag = 'internal scratch']
  %s0 = inlined_call_operand.hbm [shape: bf16[64,128], index: 0, kind: input, shape index: {}]
  %s1 = inlined_call_operand.hbm [shape: bf16[128,128], index: 1, kind: input, shape index: {}]
  %s2 = inlined_call_operand.hbm [shape: f32[1,128], index: 2, kind: input, shape index: {}]
  %s3 = inlined_call_operand.hbm [shape: bf16[128,128], index: 3, kind: input, shape index: {}]
  %s4 = inlined_call_operand.hbm [shape: f32[1,128], index: 4, kind: input, shape index: {}]
  %s5 = inlined_call_operand.hbm [shape: bf16[64,128], index: 5, kind: output, shape index: {}]
  %s6 = sld [smem:[#allocation0]]
  $region73: #{tpu_custom_call.1} parent=0
    _
  %s8 = ssub.s32 1, %s6
  %s9 = scalar_select 0, %s8, %s6
  $region1: #{tpu_custom_call.1} parent=0
    #allocation2 [shape = 'u8[16384]{0}', space=vmem, size = 0x4000, scoped, tag = 'input window, operand 0']
    #allocation3 [shape = 's32[2]{0}', space=sflag, size = 0x8, scoped, tag = 'scoped memory for tpu_custom_call.1']
    #allocation4 [shape = 's32[2]{0}', space=sflag, size = 0x8, scoped, tag = 'scoped memory for tpu_custom_call.1']
    #allocation5 [shape = 'u8[32768]{0}', space=vmem, size = 0x8000, scoped, tag = 'input window, operand 1, single buffered']
    #allocation6 [shape = 's32[1]{0}', space=sflag, size = 0x4, scoped, tag = 'scoped memory for tpu_custom_call.1']
    #allocation7 [shape = 'u8[512]{0}', space=vmem, size = 0x400, scoped, tag = 'input window, operand 2, single buffered']
    #allocation8 [shape = 'u8[32768]{0}', space=vmem, size = 0x8000, scoped, tag = 'input window, operand 3, single buffered']
    #allocation9 [shape = 's32[1]{0}', space=sflag, size = 0x4, scoped, tag = 'scoped memory for tpu_custom_call.1']
    #allocation10 [shape = 'u8[512]{0}', space=vmem, size = 0x400, scoped, tag = 'input window, operand 4, single buffered']
    #allocation11 [shape = 'u8[16384]{0}', space=vmem, size = 0x4000, scoped, tag = 'output window, operand 0']
    %10 = vsyncpa [#allocation3], 0
    %s11 = scalar_lea.sflag [#allocation3], 1
    %12 = vsyncpa %s11, 0
    %13 = vsyncpa [#allocation6], 0
    %14 = vsyncpa [#allocation9], 0
    %15 = vsyncpa [#allocation4], 0
    %s16 = scalar_lea.sflag [#allocation4], 1
    %17 = vsyncpa %s16, 0
    loop: start=0, step=1, limit=4
    $region2: #{tpu_custom_call.1} parent=1 // loop_pre_header
      _
    $region3: #{tpu_custom_call.1} parent=1 // loop_header
      %s19 = sphi 0, %s23
      %p20 = scmp.ge.s32.totalorder %s19, 4
      %s29 = sphi 0, %s31
      %s32 = sphi 0, %s29
      %s33 = sphi 0, %s32
      %s49 = sphi 0, %s33
      %s53 = sphi 0, %s53
      %s55 = sphi 0, %s53
      %s56 = sphi 0, %s55
      %s70 = sphi 0, %s56
      %s74 = sphi 0, %s74
      %s76 = sphi 0, %s74
      %s77 = sphi 0, %s76
      %s91 = sphi 0, %s77
      %s95 = sphi 0, %s95
      %s97 = sphi 0, %s95
      %s98 = sphi 0, %s97
      %s112 = sphi 0, %s98
      %s116 = sphi 0, %s116
      %s118 = sphi 0, %s116
      %s119 = sphi 0, %s118
      %s133 = sphi 0, %s119
      %s139 = sphi 0, %s141
      %s142 = sphi 0, %s139
      %s143 = sphi 0, %s142
      %s159 = sphi 0, %s143
    $region4: #{tpu_custom_call.1} parent=1 // loop_header_branch
      %22 = sbr.rel (%p20) target = $region8
    $region5: #{tpu_custom_call.1} parent=1 // loop_body
      %s24 = ssub.s32 %s19, 1
      %s25 = ssub.s32 %s19, 2
      %s26 = sadd.s32 %s19, 1
      %s27 = ssub.s32 %s19, %s26
      %p28 = scmp.eq.s32.totalorder %s27, 0
      %s30 = sadd.s32 %s29, 1
      %s31 = scalar_select %p28, %s29, %s30
      %p34 = pneg %p28
      %p35 = scmp.eq.s32.totalorder %s19, 1
      %p36 = por %p34, %p35
      %p37 = scmp.ne.s32.totalorder %s29, %s32
      %p38 = scmp.eq.s32.totalorder %s19, 0
      %p39 = por %p37, %p38
      %p40 = scmp.ne.s32.totalorder %s29, %s32
      %p41 = scmp.eq.s32.totalorder %s24, 1
      %p42 = por %p40, %p41
      %p43 = scmp.ne.s32.totalorder %s32, %s33
      %p44 = scmp.eq.s32.totalorder %s24, 0
      %p45 = por %p43, %p44
      %p46 = scmp.ne.s32.totalorder %s32, %s33
      %p47 = scmp.eq.s32.totalorder %s25, 1
      %p48 = por %p46, %p47
      %p50 = scmp.ne.s32.totalorder %s33, %s49
      %p51 = scmp.eq.s32.totalorder %s25, 0
      %p52 = por %p50, %p51
      %s54 = sadd.s32 %s53, 1
      %p57 = scmp.eq.s32.totalorder %s19, 1
      %p58 = scmp.ne.s32.totalorder %s53, %s55
      %p59 = scmp.eq.s32.totalorder %s19, 0
      %p60 = por %p58, %p59
      %p61 = scmp.ne.s32.totalorder %s53, %s55
      %p62 = scmp.eq.s32.totalorder %s24, 1
      %p63 = por %p61, %p62
      %p64 = scmp.ne.s32.totalorder %s55, %s56
      %p65 = scmp.eq.s32.totalorder %s24, 0
      %p66 = por %p64, %p65
      %p67 = scmp.ne.s32.totalorder %s55, %s56
      %p68 = scmp.eq.s32.totalorder %s25, 1
      %p69 = por %p67, %p68
      %p71 = scmp.ne.s32.totalorder %s56, %s70
      %p72 = scmp.eq.s32.totalorder %s25, 0
      %p73 = por %p71, %p72
      %s75 = sadd.s32 %s74, 1
      %p78 = scmp.eq.s32.totalorder %s19, 1
      %p79 = scmp.ne.s32.totalorder %s74, %s76
      %p80 = scmp.eq.s32.totalorder %s19, 0
      %p81 = por %p79, %p80
      %p82 = scmp.ne.s32.totalorder %s74, %s76
      %p83 = scmp.eq.s32.totalorder %s24, 1
      %p84 = por %p82, %p83
      %p85 = scmp.ne.s32.totalorder %s76, %s77
      %p86 = scmp.eq.s32.totalorder %s24, 0
      %p87 = por %p85, %p86
      %p88 = scmp.ne.s32.totalorder %s76, %s77
      %p89 = scmp.eq.s32.totalorder %s25, 1
      %p90 = por %p88, %p89
      %p92 = scmp.ne.s32.totalorder %s77, %s91
      %p93 = scmp.eq.s32.totalorder %s25, 0
      %p94 = por %p92, %p93
      %s96 = sadd.s32 %s95, 1
      %p99 = scmp.eq.s32.totalorder %s19, 1
      %p100 = scmp.ne.s32.totalorder %s95, %s97
      %p101 = scmp.eq.s32.totalorder %s19, 0
      %p102 = por %p100, %p101
      %p103 = scmp.ne.s32.totalorder %s95, %s97
      %p104 = scmp.eq.s32.totalorder %s24, 1
      %p105 = por %p103, %p104
      %p106 = scmp.ne.s32.totalorder %s97, %s98
      %p107 = scmp.eq.s32.totalorder %s24, 0
      %p108 = por %p106, %p107
      %p109 = scmp.ne.s32.totalorder %s97, %s98
      %p110 = scmp.eq.s32.totalorder %s25, 1
      %p111 = por %p109, %p110
      %p113 = scmp.ne.s32.totalorder %s98, %s112
      %p114 = scmp.eq.s32.totalorder %s25, 0
      %p115 = por %p113, %p114
      %s117 = sadd.s32 %s116, 1
      %p120 = scmp.eq.s32.totalorder %s19, 1
      %p121 = scmp.ne.s32.totalorder %s116, %s118
      %p122 = scmp.eq.s32.totalorder %s19, 0
      %p123 = por %p121, %p122
      %p124 = scmp.ne.s32.totalorder %s116, %s118
      %p125 = scmp.eq.s32.totalorder %s24, 1
      %p126 = por %p124, %p125
      %p127 = scmp.ne.s32.totalorder %s118, %s119
      %p128 = scmp.eq.s32.totalorder %s24, 0
      %p129 = por %p127, %p128
      %p130 = scmp.ne.s32.totalorder %s118, %s119
      %p131 = scmp.eq.s32.totalorder %s25, 1
      %p132 = por %p130, %p131
      %p134 = scmp.ne.s32.totalorder %s119, %s133
      %p135 = scmp.eq.s32.totalorder %s25, 0
      %p136 = por %p134, %p135
      %s137 = ssub.s32 %s19, %s26
      %p138 = scmp.eq.s32.totalorder %s137, 0
      %s140 = sadd.s32 %s139, 1
      %s141 = scalar_select %p138, %s139, %s140
      %p144 = pneg %p138
      %p145 = scmp.eq.s32.totalorder %s19, 1
      %p146 = por %p144, %p145
      %p147 = scmp.ne.s32.totalorder %s139, %s142
      %p148 = scmp.eq.s32.totalorder %s19, 0
      %p149 = por %p147, %p148
      %p150 = scmp.ne.s32.totalorder %s139, %s142
      %p151 = scmp.eq.s32.totalorder %s24, 1
      %p152 = por %p150, %p151
      %p153 = scmp.ne.s32.totalorder %s142, %s143
      %p154 = scmp.eq.s32.totalorder %s24, 0
      %p155 = por %p153, %p154
      %p156 = scmp.ne.s32.totalorder %s142, %s143
      %p157 = scmp.eq.s32.totalorder %s25, 1
      %p158 = por %p156, %p157
      %p160 = scmp.ne.s32.totalorder %s143, %s159
      %p161 = scmp.eq.s32.totalorder %s25, 0
      %p162 = por %p160, %p161
      %p163 = scmp.le.s32.totalorder 1, %s19
      %p164 = scmp.lt.s32.totalorder %s19, 3
      %p165 = pnand %p163, %p164
      %p166 = pneg %p165
      // Predicated region
      $region9: #{tpu_custom_call.1} parent=5 // pred_check
        _
      $region10: #{tpu_custom_call.1} parent=5 // pred_check_branch
        %168 = sbr.rel (%p165) target = $region12
      $region11: #{tpu_custom_call.1} parent=5 // pred_region
        %s169 = ssub.s32 %s19, 1
        // Predicated region
        $region13: #{tpu_custom_call.1} parent=11 // pred_check
          %p170 = pneg %p66
        $region14: #{tpu_custom_call.1} parent=11 // pred_check_branch
          %172 = sbr.rel (%p170) target = $region16
        $region15: #{tpu_custom_call.1} parent=11 // pred_region
          %s174 = ssub.s32 1024, 1024
          %175 = vsyncadd [#allocation6], %s174
          %s176 = sshll.u32 [#allocation5], 4
          %s177 = int_to_ptr.vmem [resolvable:$true] %s176
          %182 = dma.hbm_to_vmem [thread:$0]  %s1, 1024, %s177, [#allocation6], 64, 64, 4
        $region16: #{tpu_custom_call.1} parent=11 // pred_fallthru
          _
        // Predicated region
        $region17: #{tpu_custom_call.1} parent=11 // pred_check
          %p183 = pneg %p87
        $region18: #{tpu_custom_call.1} parent=11 // pred_check_branch
          %185 = sbr.rel (%p183) target = $region20
        $region19: #{tpu_custom_call.1} parent=11 // pred_region
          %s187 = ssub.s32 16, 16
          %188 = vsyncadd [#allocation6], %s187
          %s190 = sshll.u32 [#allocation7], 4
          %s191 = int_to_ptr.vmem [resolvable:$true] %s190
          %193 = dma.hbm_to_vmem [thread:$0]  %s2, 16, %s191, [#allocation6]
        $region20: #{tpu_custom_call.1} parent=11 // pred_fallthru
          _
        // Predicated region
        $region21: #{tpu_custom_call.1} parent=11 // pred_check
          %p194 = pneg %p108
        $region22: #{tpu_custom_call.1} parent=11 // pred_check_branch
          %196 = sbr.rel (%p194) target = $region24
        $region23: #{tpu_custom_call.1} parent=11 // pred_region
          %s198 = ssub.s32 1024, 1024
          %199 = vsyncadd [#allocation9], %s198
          %s200 = sshll.u32 [#allocation8], 4
          %s201 = int_to_ptr.vmem [resolvable:$true] %s200
          %206 = dma.hbm_to_vmem [thread:$0]  %s3, 1024, %s201, [#allocation9], 64, 64, 4
        $region24: #{tpu_custom_call.1} parent=11 // pred_fallthru
          _
        // Predicated region
        $region25: #{tpu_custom_call.1} parent=11 // pred_check
          %p207 = pneg %p129
        $region26: #{tpu_custom_call.1} parent=11 // pred_check_branch
          %209 = sbr.rel (%p207) target = $region28
        $region27: #{tpu_custom_call.1} parent=11 // pred_region
          %s211 = ssub.s32 16, 16
          %212 = vsyncadd [#allocation9], %s211
          %s214 = sshll.u32 [#allocation10], 4
          %s215 = int_to_ptr.vmem [resolvable:$true] %s214
          %217 = dma.hbm_to_vmem [thread:$0]  %s4, 16, %s215, [#allocation9]
        $region28: #{tpu_custom_call.1} parent=11 // pred_fallthru
          _
      $region12: #{tpu_custom_call.1} parent=5 // pred_fallthru
        _
      %p218 = scmp.lt.s32.totalorder %s19, 2
      // Predicated region
      $region29: #{tpu_custom_call.1} parent=5 // pred_check
        %p219 = pneg %p218
      $region30: #{tpu_custom_call.1} parent=5 // pred_check_branch
        %221 = sbr.rel (%p219) target = $region32
      $region31: #{tpu_custom_call.1} parent=5 // pred_region
        // Predicated region
        $region33: #{tpu_custom_call.1} parent=31 // pred_check
          %p222 = pneg %p39
        $region34: #{tpu_custom_call.1} parent=31 // pred_check_branch
          %224 = sbr.rel (%p222) target = $region36
        $region35: #{tpu_custom_call.1} parent=31 // pred_region
          %s225 = sand.u32 %s29, 1
          %s226 = scalar_lea.sflag [#allocation3], %s225
          %s227 = sand.u32 %s29, 1
          %s228 = smul.addr %s227, 16
          %s229 = scalar_lea.vmem [#allocation2], %s228
          %s230 = smul.u32 4, %s19
          %s232 = ssub.s32 256, 256
          %233 = vsyncadd %s226, %s232
          %s234 = smul.addr %s230, 64
          %s235 = scalar_lea.hbm %s0, %s234
          %s236 = sshll.u32 %s229, 4
          %s237 = int_to_ptr.vmem [resolvable:$true] %s236
          %242 = dma.hbm_to_vmem [thread:$0]  %s235, 256, %s237, %s226, 64, 64, 4
        $region36: #{tpu_custom_call.1} parent=31 // pred_fallthru
          _
      $region32: #{tpu_custom_call.1} parent=5 // pred_fallthru
        _
      %p243 = scmp.le.s32.totalorder 1, %s19
      %p244 = scmp.lt.s32.totalorder %s19, 3
      %p245 = pnand %p243, %p244
      %p246 = pneg %p245
      // Predicated region
      $region37: #{tpu_custom_call.1} parent=5 // pred_check
        _
      $region38: #{tpu_custom_call.1} parent=5 // pred_check_branch
        %248 = sbr.rel (%p245) target = $region40
      $region39: #{tpu_custom_call.1} parent=5 // pred_region
        %s249 = ssub.s32 %s19, 1
        %s250 = sand.u32 %s32, 1
        %s251 = scalar_lea.sflag [#allocation3], %s250
        %s252 = sand.u32 %s32, 1
        %s253 = smul.addr %s252, 16
        %s254 = scalar_lea.vmem [#allocation2], %s253
        // Predicated region
        $region41: #{tpu_custom_call.1} parent=39 // pred_check
          %p255 = pneg %p45
        $region42: #{tpu_custom_call.1} parent=39 // pred_check_branch
          %257 = sbr.rel (%p255) target = $region44
        $region43: #{tpu_custom_call.1} parent=39 // pred_region
          %258 = dma.done %s251, 256
        $region44: #{tpu_custom_call.1} parent=39 // pred_fallthru
          _
        // Predicated region
        $region45: #{tpu_custom_call.1} parent=39 // pred_check
          %p259 = pneg %p66
        $region46: #{tpu_custom_call.1} parent=39 // pred_check_branch
          %261 = sbr.rel (%p259) target = $region48
        $region47: #{tpu_custom_call.1} parent=39 // pred_region
          %262 = dma.done [#allocation6], 1024
        $region48: #{tpu_custom_call.1} parent=39 // pred_fallthru
          _
        // Predicated region
        $region49: #{tpu_custom_call.1} parent=39 // pred_check
          %p263 = pneg %p87
        $region50: #{tpu_custom_call.1} parent=39 // pred_check_branch
          %265 = sbr.rel (%p263) target = $region52
        $region51: #{tpu_custom_call.1} parent=39 // pred_region
          %266 = dma.done [#allocation6], 16
        $region52: #{tpu_custom_call.1} parent=39 // pred_fallthru
          _
        // Predicated region
        $region53: #{tpu_custom_call.1} parent=39 // pred_check
          %p267 = pneg %p108
        $region54: #{tpu_custom_call.1} parent=39 // pred_check_branch
          %269 = sbr.rel (%p267) target = $region56
        $region55: #{tpu_custom_call.1} parent=39 // pred_region
          %270 = dma.done [#allocation9], 1024
        $region56: #{tpu_custom_call.1} parent=39 // pred_fallthru
          _
        // Predicated region
        $region57: #{tpu_custom_call.1} parent=39 // pred_check
          %p271 = pneg %p129
        $region58: #{tpu_custom_call.1} parent=39 // pred_check_branch
          %273 = sbr.rel (%p271) target = $region60
        $region59: #{tpu_custom_call.1} parent=39 // pred_region
          %274 = dma.done [#allocation9], 16
        $region60: #{tpu_custom_call.1} parent=39 // pred_fallthru
          _
        %s275 = sand.u32 %s32, 1
        %s276 = scalar_lea.sflag [#allocation3], %s275
        %s277 = sand.u32 %s32, 1
        %s278 = smul.addr %s277, 16
        %s279 = scalar_lea.vmem [#allocation2], %s278
        %p280 = pneg %p45
        %p281 = pneg %p42
        %p282 = pneg %p66
        %p283 = pneg %p63
        %p284 = pneg %p87
        %p285 = pneg %p84
        %p286 = pneg %p108
        %p287 = pneg %p105
        %p288 = pneg %p129
        %p289 = pneg %p126
        %p290 = pneg %p155
        %p291 = pneg %p152
        %s292 = sand.u32 %s142, 1
        %s293 = scalar_lea.sflag [#allocation4], %s292
        %s294 = sand.u32 %s142, 1
        %s295 = smul.addr %s294, 16
        %s296 = scalar_lea.vmem [#allocation11], %s295
        %s297 = smul.u32 4, %s24
        %s298 = smul.u32 4, %s24
        %v300 = vld [vmem:[%s254] sm:$0xf]
        %v301 = vld [vmem:[%s254 + $0x4] sm:$0xf]
        %v302 = vld [vmem:[%s254 + $0x8] sm:$0xf]
        %v303 = vld [vmem:[%s254 + $0xc] sm:$0xf]
        %v304 = vld [vmem:[#allocation5] sm:$0xf]
        %v305 = vld [vmem:[#allocation5 + $0x4] sm:$0xf]
        %v306 = vld [vmem:[#allocation5 + $0x8] sm:$0xf]
        %v307 = vld [vmem:[#allocation5 + $0xc] sm:$0xf]
        %v308 = vld [vmem:[#allocation5 + $0x10] sm:$0xf]
        %v309 = vld [vmem:[#allocation5 + $0x14] sm:$0xf]
        %v310 = vld [vmem:[#allocation5 + $0x18] sm:$0xf]
        %v311 = vld [vmem:[#allocation5 + $0x1c] sm:$0xf]
        %v312 = vld [vmem:[#allocation5 + $0x20] sm:$0xf]
        %v313 = vld [vmem:[#allocation5 + $0x24] sm:$0xf]
        %v314 = vld [vmem:[#allocation5 + $0x28] sm:$0xf]
        %v315 = vld [vmem:[#allocation5 + $0x2c] sm:$0xf]
        %v316 = vld [vmem:[#allocation5 + $0x30] sm:$0xf]
        %v317 = vld [vmem:[#allocation5 + $0x34] sm:$0xf]
        %v318 = vld [vmem:[#allocation5 + $0x38] sm:$0xf]
        %v319 = vld [vmem:[#allocation5 + $0x3c] sm:$0xf]
        %v320 = vld [vmem:[#allocation7] sm:$0x1]
        %v322 = vlaneseq
        %v323 = vshrl.u32 %v322, 7
        %v324 = vsub.s32 0, %v323
        %v325 = vrot.slane %v320, %v324
        %v331 = vunpack.c.l.b16 %v300
        %v332 = vunpack.c.l.b16 %v301
        %v333 = vunpack.c.l.b16 %v302
        %v334 = vunpack.c.l.b16 %v303
        %v335 = vpack.c.b16 %v332, %v331
        %v336 = vpack.c.b16 %v334, %v333
        %v355 = vunpack.c.l.b16 %v304
        %v356 = vunpack.c.l.b16 %v305
        %v357 = vunpack.c.l.b16 %v306
        %v358 = vunpack.c.l.b16 %v307
        %v359 = vunpack.c.l.b16 %v308
        %v360 = vunpack.c.l.b16 %v309
        %v361 = vunpack.c.l.b16 %v310
        %v362 = vunpack.c.l.b16 %v311
        %v363 = vunpack.c.l.b16 %v312
        %v364 = vunpack.c.l.b16 %v313
        %v365 = vunpack.c.l.b16 %v314
        %v366 = vunpack.c.l.b16 %v315
        %v367 = vunpack.c.l.b16 %v316
        %v368 = vunpack.c.l.b16 %v317
        %v369 = vunpack.c.l.b16 %v318
        %v370 = vunpack.c.l.b16 %v319
        %v371 = vpack.c.b16 %v356, %v355
        %v372 = vpack.c.b16 %v358, %v357
        %v373 = vpack.c.b16 %v360, %v359
        %v374 = vpack.c.b16 %v362, %v361
        %v375 = vpack.c.b16 %v364, %v363
        %v376 = vpack.c.b16 %v366, %v365
        %v377 = vpack.c.b16 %v368, %v367
        %v378 = vpack.c.b16 %v370, %v369
        %387 = vmatprep.subr.bf16.mxu0 0
        %388 = vmatpush1.bf16.msra.mxu0 %v371
        %389 = vmatprep.subr.bf16.mxu0 0
        %390 = vmatpush1.bf16.msra.mxu0 %v372
        %391 = vmatprep.subr.bf16.mxu0 0
        %392 = vmatpush1.bf16.msra.mxu0 %v373
        %393 = vmatprep.subr.bf16.mxu0 0
        %394 = vmatpush1.bf16.msra.mxu0 %v374
        %395 = vmatprep.subr.bf16.mxu0 0
        %396 = vmatpush1.bf16.msra.mxu0 %v375
        %397 = vmatprep.subr.bf16.mxu0 0
        %398 = vmatpush1.bf16.msra.mxu0 %v376
        %399 = vmatprep.subr.bf16.mxu0 0
        %400 = vmatpush1.bf16.msra.mxu0 %v377
        %401 = vmatprep.subr.bf16.mxu0 0
        %402 = vmatpush1.bf16.msra.mxu0 %v378
        %403 = vmatprep.subr.bf16.mxu0 0
        %404 = vmatpush1.bf16.msra.mxu0 0
        %405 = vmatprep.subr.bf16.mxu0 0
        %406 = vmatpush1.bf16.msra.mxu0 0
        %407 = vmatprep.subr.bf16.mxu0 0
        %408 = vmatpush1.bf16.msra.mxu0 0
        %409 = vmatprep.subr.bf16.mxu0 0
        %410 = vmatpush1.bf16.msra.mxu0 0
        %411 = vmatprep.subr.bf16.mxu0 0
        %412 = vmatpush1.bf16.msra.mxu0 0
        %413 = vmatprep.subr.bf16.mxu0 0
        %414 = vmatpush1.bf16.msra.mxu0 0
        %415 = vmatprep.subr.bf16.mxu0 0
        %416 = vmatpush1.bf16.msra.mxu0 0
        %417 = vmatprep.subr.bf16.mxu0 0
        %418 = vmatpush1.bf16.msra.mxu0 0
        %419 = vmatprep.mubr.bf16.mxu0 0
        %420 = vmatmul.mubr.bf16.gmra.mrb[0].mxu0 %v335
        %v421 = vpop.f32.mrb[0].mxu0
        %v422 = vadd.f32 %v325, %v421
        %v423 = vpop.f32.mrb[0].mxu0
        %v424 = vpop.f32.mrb[0].mxu0
        %v425 = vadd.f32 %v325, %v424
        %v426 = vpop.f32.mrb[0].mxu0
        %427 = vmatprep.mubr.bf16.mxu0 0
        %428 = vmatmul.mubr.bf16.gmra.mrb[0].mxu0 %v336
        %v429 = vpop.f32.mrb[0].mxu0
        %v430 = vadd.f32 %v325, %v429
        %v431 = vpop.f32.mrb[0].mxu0
        %v432 = vpop.f32.mrb[0].mxu0
        %v433 = vadd.f32 %v325, %v432
        %v434 = vpop.f32.mrb[0].mxu0
        %435 = vdwg.mxu0
        %v436 = vtanh.pop %v422
        %v437 = vtanh.pop %v425
        %v438 = vtanh.pop %v430
        %v439 = vtanh.pop %v433
        %v440 = vpack.c.bf16 %v437, %v436
        %v441 = vpack.c.bf16 %v439, %v438
        %v442 = vld [vmem:[#allocation8] sm:$0xf]
        %v443 = vld [vmem:[#allocation8 + $0x4] sm:$0xf]
        %v444 = vld [vmem:[#allocation8 + $0x8] sm:$0xf]
        %v445 = vld [vmem:[#allocation8 + $0xc] sm:$0xf]
        %v446 = vld [vmem:[#allocation8 + $0x10] sm:$0xf]
        %v447 = vld [vmem:[#allocation8 + $0x14] sm:$0xf]
        %v448 = vld [vmem:[#allocation8 + $0x18] sm:$0xf]
        %v449 = vld [vmem:[#allocation8 + $0x1c] sm:$0xf]
        %v450 = vld [vmem:[#allocation8 + $0x20] sm:$0xf]
        %v451 = vld [vmem:[#allocation8 + $0x24] sm:$0xf]
        %v452 = vld [vmem:[#allocation8 + $0x28] sm:$0xf]
        %v453 = vld [vmem:[#allocation8 + $0x2c] sm:$0xf]
        %v454 = vld [vmem:[#allocation8 + $0x30] sm:$0xf]
        %v455 = vld [vmem:[#allocation8 + $0x34] sm:$0xf]
        %v456 = vld [vmem:[#allocation8 + $0x38] sm:$0xf]
        %v457 = vld [vmem:[#allocation8 + $0x3c] sm:$0xf]
        %v458 = vld [vmem:[#allocation10] sm:$0x1]
        %v460 = vlaneseq
        %v461 = vshrl.u32 %v460, 7
        %v462 = vsub.s32 0, %v461
        %v463 = vrot.slane %v458, %v462
        %v481 = vunpack.c.l.b16 %v442
        %v482 = vunpack.c.l.b16 %v443
        %v483 = vunpack.c.l.b16 %v444
        %v484 = vunpack.c.l.b16 %v445
        %v485 = vunpack.c.l.b16 %v446
        %v486 = vunpack.c.l.b16 %v447
        %v487 = vunpack.c.l.b16 %v448
        %v488 = vunpack.c.l.b16 %v449
        %v489 = vunpack.c.l.b16 %v450
        %v490 = vunpack.c.l.b16 %v451
        %v491 = vunpack.c.l.b16 %v452
        %v492 = vunpack.c.l.b16 %v453
        %v493 = vunpack.c.l.b16 %v454
        %v494 = vunpack.c.l.b16 %v455
        %v495 = vunpack.c.l.b16 %v456
        %v496 = vunpack.c.l.b16 %v457
        %v497 = vpack.c.b16 %v482, %v481
        %v498 = vpack.c.b16 %v484, %v483
        %v499 = vpack.c.b16 %v486, %v485
        %v500 = vpack.c.b16 %v488, %v487
        %v501 = vpack.c.b16 %v490, %v489
        %v502 = vpack.c.b16 %v492, %v491
        %v503 = vpack.c.b16 %v494, %v493
        %v504 = vpack.c.b16 %v496, %v495
        %513 = vmatprep.subr.bf16.mxu0 0
        %514 = vmatpush1.bf16.msra.mxu0 %v497
        %515 = vmatprep.subr.bf16.mxu0 0
        %516 = vmatpush1.bf16.msra.mxu0 %v498
        %517 = vmatprep.subr.bf16.mxu0 0
        %518 = vmatpush1.bf16.msra.mxu0 %v499
        %519 = vmatprep.subr.bf16.mxu0 0
        %520 = vmatpush1.bf16.msra.mxu0 %v500
        %521 = vmatprep.subr.bf16.mxu0 0
        %522 = vmatpush1.bf16.msra.mxu0 %v501
        %523 = vmatprep.subr.bf16.mxu0 0
        %524 = vmatpush1.bf16.msra.mxu0 %v502
        %525 = vmatprep.subr.bf16.mxu0 0
        %526 = vmatpush1.bf16.msra.mxu0 %v503
        %527 = vmatprep.subr.bf16.mxu0 0
        %528 = vmatpush1.bf16.msra.mxu0 %v504
        %529 = vmatprep.subr.bf16.mxu0 0
        %530 = vmatpush1.bf16.msra.mxu0 0
        %531 = vmatprep.subr.bf16.mxu0 0
        %532 = vmatpush1.bf16.msra.mxu0 0
        %533 = vmatprep.subr.bf16.mxu0 0
        %534 = vmatpush1.bf16.msra.mxu0 0
        %535 = vmatprep.subr.bf16.mxu0 0
        %536 = vmatpush1.bf16.msra.mxu0 0
        %537 = vmatprep.subr.bf16.mxu0 0
        %538 = vmatpush1.bf16.msra.mxu0 0
        %539 = vmatprep.subr.bf16.mxu0 0
        %540 = vmatpush1.bf16.msra.mxu0 0
        %541 = vmatprep.subr.bf16.mxu0 0
        %542 = vmatpush1.bf16.msra.mxu0 0
        %543 = vmatprep.subr.bf16.mxu0 0
        %544 = vmatpush1.bf16.msra.mxu0 0
        %545 = vmatprep.mubr.bf16.mxu0 0
        %546 = vmatmul.mubr.bf16.gmra.mrb[0].mxu0 %v440
        %v547 = vpop.f32.mrb[0].mxu0
        %v548 = vadd.f32 %v463, %v547
        %v549 = vpop.f32.mrb[0].mxu0
        %v550 = vpop.f32.mrb[0].mxu0
        %v551 = vadd.f32 %v463, %v550
        %v552 = vpop.f32.mrb[0].mxu0
        %553 = vmatprep.mubr.bf16.mxu0 0
        %554 = vmatmul.mubr.bf16.gmra.mrb[0].mxu0 %v441
        %v555 = vpop.f32.mrb[0].mxu0
        %v556 = vadd.f32 %v463, %v555
        %v557 = vpop.f32.mrb[0].mxu0
        %v558 = vpop.f32.mrb[0].mxu0
        %v559 = vadd.f32 %v463, %v558
        %v560 = vpop.f32.mrb[0].mxu0
        %561 = vdwg.mxu0
        %v562 = vmax.f32 %v548, 0.0
        %v563 = vmax.f32 %v551, 0.0
        %v564 = vmax.f32 %v556, 0.0
        %v565 = vmax.f32 %v559, 0.0
        %v566 = vpack.c.bf16 %v563, %v562
        %v567 = vpack.c.bf16 %v565, %v564
        %v570 = vunpack.c.l.b16 %v566
        %v571 = vunpack.c.h.b16 %v566
        %v572 = vunpack.c.l.b16 %v567
        %v573 = vunpack.c.h.b16 %v567
        %v574 = vpack.c.b16 %v570, %v570
        %v575 = vpack.c.b16 %v571, %v571
        %v576 = vpack.c.b16 %v572, %v572
        %v577 = vpack.c.b16 %v573, %v573
        %582 = vst [vmem:[%s296] sm:$0xf] %v574
        %583 = vst [vmem:[%s296 + $0x4] sm:$0xf] %v575
        %584 = vst [vmem:[%s296 + $0x8] sm:$0xf] %v576
        %585 = vst [vmem:[%s296 + $0xc] sm:$0xf] %v577
        %s586 = sand.u32 %s142, 1
        %s587 = scalar_lea.sflag [#allocation4], %s586
        %s588 = sand.u32 %s142, 1
        %s589 = smul.addr %s588, 16
        %s590 = scalar_lea.vmem [#allocation11], %s589
        // Predicated region
        $region61: #{tpu_custom_call.1} parent=39 // pred_check
          %p591 = pneg %p152
        $region62: #{tpu_custom_call.1} parent=39 // pred_check_branch
          %593 = sbr.rel (%p591) target = $region64
        $region63: #{tpu_custom_call.1} parent=39 // pred_region
          %s594 = smul.u32 4, %s24
          %s596 = ssub.s32 256, 256
          %597 = vsyncadd %s587, %s596
          %s598 = smul.addr %s594, 64
          %s599 = scalar_lea.hbm %s5, %s598
          %s600 = sshll.u32 %s590, 4
          %s601 = int_to_ptr.vmem [resolvable:$true] %s600
          %606 = dma.vmem_to_hbm [thread:$0]  %s601, 256, %s599, %s587, 64, 64, 4
        $region64: #{tpu_custom_call.1} parent=39 // pred_fallthru
          _
      $region40: #{tpu_custom_call.1} parent=5 // pred_fallthru
        _
      %p607 = scmp.le.s32.totalorder 2, %s19
      // Predicated region
      $region65: #{tpu_custom_call.1} parent=5 // pred_check
        %p608 = pneg %p607
      $region66: #{tpu_custom_call.1} parent=5 // pred_check_branch
        %610 = sbr.rel (%p608) target = $region68
      $region67: #{tpu_custom_call.1} parent=5 // pred_region
        %s611 = ssub.s32 %s19, 2
        // Predicated region
        $region69: #{tpu_custom_call.1} parent=67 // pred_check
          %p612 = pneg %p158
        $region70: #{tpu_custom_call.1} parent=67 // pred_check_branch
          %614 = sbr.rel (%p612) target = $region72
        $region71: #{tpu_custom_call.1} parent=67 // pred_region
          %s615 = sand.u32 %s143, 1
          %s616 = scalar_lea.sflag [#allocation4], %s615
          %s617 = sand.u32 %s143, 1
          %s618 = smul.addr %s617, 16
          %s619 = scalar_lea.vmem [#allocation11], %s618
          %620 = dma.done %s616, 256
        $region72: #{tpu_custom_call.1} parent=67 // pred_fallthru
          _
      $region68: #{tpu_custom_call.1} parent=5 // pred_fallthru
        _
    $region6: #{tpu_custom_call.1} parent=1 // loop_footer
      %s23 = sadd.s32 1, %s19
    $region7: #{tpu_custom_call.1} parent=1 // loop_footer_branch
      %18 = sbr.rel target = $region3
    $region8: #{tpu_custom_call.1} parent=1 // loop_exit
      _
    %621 = vsyncpa [#allocation3], 1
    %s622 = scalar_lea.sflag [#allocation3], 1
    %623 = vsyncpa %s622, 1
    %624 = vsyncpa [#allocation6], 1
    %625 = vsyncpa [#allocation9], 1
    %626 = vsyncpa [#allocation4], 1
    %s627 = scalar_lea.sflag [#allocation4], 1
    %628 = vsyncpa %s627, 1

</llo_original>
